<compile_context>
chip_gen: v7x
topology: tpu7x:2x2x1
jax: 0.10.0
libtpu: 0.0.40
codegen_flags: <defaults>
</compile_context>

<pallas_src>
import numpy as np
import jax
import jax.numpy as jnp
from jax.experimental import pallas as pl
from jax.experimental.pallas import tpu as pltpu

LOG_2PI = float(np.log(2.0 * np.pi))
_LANES = 128
_SUBLANES = 8
_MAX_BLOCK_ROWS = 4096   # 4096 x 128 x 4 B = 2 MiB per f32 block


def _round_up(x, m):
    return ((x + m - 1) // m) * m


def _cdiv(a, b):
    return -(-a // b)


def _sum_sq_kernel(z_ref, out_ref, acc_ref):
    """Accumulate sum(z^2); write an (8, 128) partial per parallel partition."""
    s = pl.program_id(1)

    @pl.when(s == 0)
    def _init():
        acc_ref[...] = jnp.zeros_like(acc_ref)

    # Hot path: pure VPU elementwise, no XLU reduce, no scalar RMW chain.
    z = z_ref[...].astype(jnp.float32)
    acc_ref[...] += z * z

    @pl.when(s == pl.num_programs(1) - 1)
    def _finalize():
        r, l = acc_ref.shape
        # Fold the block-shaped accumulator down to a single (8, 128) tile.
        out_ref[...] = acc_ref[...].reshape(r // _SUBLANES, _SUBLANES, l).sum(axis=0)


def _sum_squares(z2d, *, partitions, steps, block_rows):
    return pl.pallas_call(
        _sum_sq_kernel,
        out_shape=jax.ShapeDtypeStruct((partitions * _SUBLANES, _LANES), jnp.float32),
        grid_spec=pltpu.PrefetchScalarGridSpec(
            num_scalar_prefetch=0,
            grid=(partitions, steps),
            in_specs=[
                pl.BlockSpec((block_rows, _LANES), lambda p, s: (p * steps + s, 0)),
            ],
            out_specs=pl.BlockSpec((_SUBLANES, _LANES), lambda p, s: (p, 0)),
            scratch_shapes=[pltpu.VMEM((block_rows, _LANES), jnp.float32)],
        ),
        compiler_params=pltpu.CompilerParams(
            dimension_semantics=("parallel", "arbitrary"),
            vmem_limit_bytes=32 * 1024 * 1024,
        ),
    )(z2d)


def nll_loss(z, sldj, k=256):
    """Pallas equivalent of NLLLoss(k).forward(z, sldj). Returns a scalar."""
    B = z.shape[0]
    D = int(np.prod(z.shape[1:]))
    n = B * D

    # --- layout: dense (rows, 128) slab, rows multiple of 8, zero padded ----
    rows = _cdiv(n, _LANES)
    rows8 = _round_up(rows, _SUBLANES)
    partitions = 2 if rows8 >= 2 * _SUBLANES else 1          # 2 TCs on v7x
    steps = _cdiv(rows8, partitions * _MAX_BLOCK_ROWS)
    block_rows = _round_up(_cdiv(rows8, partitions * steps), _SUBLANES)
    rows_padded = partitions * steps * block_rows

    z_flat = z.reshape(-1)                 # keep input dtype (bf16 stays bf16)
    pad = rows_padded * _LANES - n
    if pad:
        z_flat = jnp.concatenate([z_flat, jnp.zeros((pad,), dtype=z_flat.dtype)])
    z2d = z_flat.reshape(rows_padded, _LANES)

    partials = _sum_squares(
        z2d, partitions=partitions, steps=steps, block_rows=block_rows
    )
    s_zsq = jnp.sum(partials)

    # --- tiny scalar tail (O(B) work), done with jnp outside the kernel ----
    # sum_b prior_ll_b = -0.5*sum(z^2) - 0.5*log(2pi)*B*D - log(k)*B*D
    const = jnp.float32(0.5 * LOG_2PI * B * D + np.log(k) * B * D)
    ll_sum = -0.5 * s_zsq - const + jnp.sum(sldj.astype(jnp.float32))
    return -(ll_sum / jnp.float32(B))       # nll = -mean(ll)


def _reference_nll(z, sldj, k=256):
    z = z.astype(jnp.float32)
    prior_ll = -0.5 * (z ** 2 + LOG_2PI)
    prior_ll = prior_ll.reshape(z.shape[0], -1).sum(-1) - np.log(k) * np.prod(
        z.shape[1:]
    )
    ll = prior_ll + sldj.astype(jnp.float32)
    return -ll.mean()


if __name__ == "__main__":
    key = jax.random.PRNGKey(0)
    kz, ks = jax.random.split(key)
    # Small shapes consistent with a flow output: z NCHW, sldj per-sample.
    z = jax.random.normal(kz, (2, 4, 16, 16), dtype=jnp.float32)
    sldj = jax.random.normal(ks, (2,), dtype=jnp.float32)

    nll = jax.block_until_ready(nll_loss(z, sldj, k=256))
    ref = jax.block_until_ready(_reference_nll(z, sldj, k=256))
    np.testing.assert_allclose(np.asarray(nll), np.asarray(ref), rtol=1e-5, atol=1e-5)

    print("KERNEL_OK")
</pallas_src>

<mosaic_0001>
module attributes {stable_mosaic.version = 11 : i64} {
  func.func @_sum_sq_kernel(%arg0: i32, %arg1: i32, %arg2: memref<8x128xf32, #tpu.memory_space<vmem>>, %arg3: memref<8x128xf32, #tpu.memory_space<vmem>>, %arg4: memref<8x128xf32, #tpu.memory_space<vmem>>) attributes {dimension_semantics = [#tpu.dimension_semantics<parallel>, #tpu.dimension_semantics<arbitrary>], iteration_bounds = array<i64: 2, 1>, scalar_prefetch = 0 : i64, scratch_operands = 1 : i64, tpu.core_type = #tpu.core_type<tc>, window_params = [{transform_indices = @transform_0, window_bounds = array<i64: 8, 128>}, {transform_indices = @transform_1, window_bounds = array<i64: 8, 128>}]} {
    %c0_i32 = arith.constant 0 : i32
    %0 = arith.cmpi eq, %arg1, %c0_i32 : i32
    %1 = arith.extui %0 : i1 to i32
    %c0_i32_0 = arith.constant 0 : i32
    %2 = arith.cmpi ne, %1, %c0_i32_0 : i32
    scf.if %2 {
      %cst = arith.constant 0.000000e+00 : f32
      %11 = vector.broadcast %cst : f32 to vector<8x128xf32>
      %c0_8 = arith.constant 0 : index
      %c0_9 = arith.constant 0 : index
      %12 = vector.load %arg4[%c0_8, %c0_9] : memref<8x128xf32, #tpu.memory_space<vmem>>, vector<8x128xf32>
      tpu.vector_store %arg4[%c0_8, %c0_9], %11 {strides = array<i32>} : memref<8x128xf32, #tpu.memory_space<vmem>>, vector<8x128xf32>,
    } else {
    }
    %c0 = arith.constant 0 : index
    %c0_1 = arith.constant 0 : index
    %3 = vector.load %arg2[%c0, %c0_1] : memref<8x128xf32, #tpu.memory_space<vmem>>, vector<8x128xf32>
    %c0_2 = arith.constant 0 : index
    %c0_3 = arith.constant 0 : index
    %4 = vector.load %arg4[%c0_2, %c0_3] : memref<8x128xf32, #tpu.memory_space<vmem>>, vector<8x128xf32>
    %5 = arith.mulf %3, %3 : vector<8x128xf32>
    %6 = arith.addf %4, %5 : vector<8x128xf32>
    %c0_4 = arith.constant 0 : index
    %c0_5 = arith.constant 0 : index
    %7 = vector.load %arg4[%c0_4, %c0_5] : memref<8x128xf32, #tpu.memory_space<vmem>>, vector<8x128xf32>
    tpu.vector_store %arg4[%c0_4, %c0_5], %6 {strides = array<i32>} : memref<8x128xf32, #tpu.memory_space<vmem>>, vector<8x128xf32>,
    %c0_i32_6 = arith.constant 0 : i32
    %8 = arith.cmpi eq, %arg1, %c0_i32_6 : i32
    %9 = arith.extui %8 : i1 to i32
    %c0_i32_7 = arith.constant 0 : i32
    %10 = arith.cmpi ne, %9, %c0_i32_7 : i32
    scf.if %10 {
      %c0_8 = arith.constant 0 : index
      %c0_9 = arith.constant 0 : index
      %11 = vector.load %arg4[%c0_8, %c0_9] : memref<8x128xf32, #tpu.memory_space<vmem>>, vector<8x128xf32>
      %12 = vector.shape_cast %11 : vector<8x128xf32> to vector<1x8x128xf32>
      %cst = arith.constant dense<0.000000e+00> : vector<8x128xf32>
      %13 = vector.multi_reduction <add>, %12, %cst [0] : vector<1x8x128xf32> to vector<8x128xf32>
      %c0_10 = arith.constant 0 : index
      %c0_11 = arith.constant 0 : index
      %14 = vector.load %arg3[%c0_10, %c0_11] : memref<8x128xf32, #tpu.memory_space<vmem>>, vector<8x128xf32>
      tpu.vector_store %arg3[%c0_10, %c0_11], %13 {strides = array<i32>} : memref<8x128xf32, #tpu.memory_space<vmem>>, vector<8x128xf32>,
    } else {
    }
    return
  }
  func.func @transform_0(%arg0: i32, %arg1: i32) -> (i32, i32) {
    %c1_i32 = arith.constant 1 : i32
    %0 = arith.muli %arg0, %c1_i32 : i32
    %1 = arith.addi %0, %arg1 : i32
    %c0_i32 = arith.constant 0 : i32
    %c0_i32_0 = arith.constant 0 : i32
    return %1, %c0_i32 : i32, i32
  }
  func.func @transform_1(%arg0: i32, %arg1: i32) -> (i32, i32) {
    %c0_i32 = arith.constant 0 : i32
    %c0_i32_0 = arith.constant 0 : i32
    return %arg0, %c0_i32 : i32, i32
  }
}

</mosaic_0001>

<llo_original>
// kernel: tpu_custom_call.1
$region0: #{tpu_custom_call.1}
  #allocation0 [shape = 'u32[]', space=smem, size = 0x4, offset = 0x4, fixed_abs, tag = 'smem constant byte address 0x4 - core index']
  #allocation1 [shape = 'u32[144,128]{1,0:T(1,128)}', space=vmem, size = 0x12000, scoped, tag = 'internal scratch']
  #allocation2 [shape = 'f32[8,128]{1,0:T(8,128)}', space=vmem, size = 0x1000, scoped, tag = 'scratch operand']
  %s0 = inlined_call_operand.hbm [shape: f32[16,128], index: 0, kind: input, shape index: {}]
  %s1 = inlined_call_operand.hbm [shape: f32[16,128], index: 1, kind: output, shape index: {}]
  %s2 = sld [smem:[#allocation0]]
  $region49: #{tpu_custom_call.1} parent=0
    _
  %s4 = ssub.s32 1, %s2
  %s5 = scalar_select 0, %s4, %s2
  $region1: #{tpu_custom_call.1} parent=0
    #allocation3 [shape = 'u8[8192]{0}', space=vmem, size = 0x2000, scoped, tag = 'input window, operand 0']
    #allocation4 [shape = 's32[2]{0}', space=sflag, size = 0x8, scoped, tag = 'scoped memory for tpu_custom_call.1']
    #allocation5 [shape = 's32[2]{0}', space=sflag, size = 0x8, scoped, tag = 'scoped memory for tpu_custom_call.1']
    #allocation6 [shape = 'u8[8192]{0}', space=vmem, size = 0x2000, scoped, tag = 'output window, operand 0']
    %6 = vsyncpa [#allocation4], 0
    %s7 = scalar_lea.sflag [#allocation4], 1
    %8 = vsyncpa %s7, 0
    %9 = vsyncpa [#allocation5], 0
    %s10 = scalar_lea.sflag [#allocation5], 1
    %11 = vsyncpa %s10, 0
    loop: start=0, step=1, limit=4
    $region2: #{tpu_custom_call.1} parent=1 // loop_pre_header
      _
    $region3: #{tpu_custom_call.1} parent=1 // loop_header
      %s13 = sphi 0, %s17
      %p14 = scmp.ge.s32.totalorder %s13, 4
      %s20 = sphi 0, %s32
      %s21 = sphi 0, %s28
      %s22 = sphi 0, %s20
      %s23 = sphi 0, %s21
      %s24 = sphi 0, %s22
      %s25 = sphi 0, %s23
      %s37 = sphi 0, %s39
      %s40 = sphi 0, %s37
      %s41 = sphi 0, %s40
      %s57 = sphi 0, %s41
      %s63 = sphi 0, %s65
      %s66 = sphi 0, %s63
      %s67 = sphi 0, %s66
      %s83 = sphi 0, %s67
    $region4: #{tpu_custom_call.1} parent=1 // loop_header_branch
      %16 = sbr.rel (%p14) target = $region8
    $region5: #{tpu_custom_call.1} parent=1 // loop_body
      %s18 = ssub.s32 %s13, 1
      %s19 = ssub.s32 %s13, 2
      %s26 = sadd.s32 1, %s21
      %p27 = scmp.ge.s32.totalorder %s26, 1
      %s28 = scalar_select %p27, 0, %s26
      %s29 = sadd.s32 1, %s20
      %s30 = scalar_select %p27, %s29, %s20
      %p31 = scmp.ge.s32.totalorder %s30, 2
      %s32 = scalar_select %p31, 0, %s30
      %s33 = sadd.s32 %s20, %s21
      %s34 = sadd.s32 %s32, %s28
      %s35 = ssub.s32 %s33, %s34
      %p36 = scmp.eq.s32.totalorder %s35, 0
      %s38 = sadd.s32 %s37, 1
      %s39 = scalar_select %p36, %s37, %s38
      %p42 = pneg %p36
      %p43 = scmp.eq.s32.totalorder %s13, 1
      %p44 = por %p42, %p43
      %p45 = scmp.ne.s32.totalorder %s37, %s40
      %p46 = scmp.eq.s32.totalorder %s13, 0
      %p47 = por %p45, %p46
      %p48 = scmp.ne.s32.totalorder %s37, %s40
      %p49 = scmp.eq.s32.totalorder %s18, 1
      %p50 = por %p48, %p49
      %p51 = scmp.ne.s32.totalorder %s40, %s41
      %p52 = scmp.eq.s32.totalorder %s18, 0
      %p53 = por %p51, %p52
      %p54 = scmp.ne.s32.totalorder %s40, %s41
      %p55 = scmp.eq.s32.totalorder %s19, 1
      %p56 = por %p54, %p55
      %p58 = scmp.ne.s32.totalorder %s41, %s57
      %p59 = scmp.eq.s32.totalorder %s19, 0
      %p60 = por %p58, %p59
      %s61 = ssub.s32 %s20, %s32
      %p62 = scmp.eq.s32.totalorder %s61, 0
      %s64 = sadd.s32 %s63, 1
      %s65 = scalar_select %p62, %s63, %s64
      %p68 = pneg %p62
      %p69 = scmp.eq.s32.totalorder %s13, 1
      %p70 = por %p68, %p69
      %p71 = scmp.ne.s32.totalorder %s63, %s66
      %p72 = scmp.eq.s32.totalorder %s13, 0
      %p73 = por %p71, %p72
      %p74 = scmp.ne.s32.totalorder %s63, %s66
      %p75 = scmp.eq.s32.totalorder %s18, 1
      %p76 = por %p74, %p75
      %p77 = scmp.ne.s32.totalorder %s66, %s67
      %p78 = scmp.eq.s32.totalorder %s18, 0
      %p79 = por %p77, %p78
      %p80 = scmp.ne.s32.totalorder %s66, %s67
      %p81 = scmp.eq.s32.totalorder %s19, 1
      %p82 = por %p80, %p81
      %p84 = scmp.ne.s32.totalorder %s67, %s83
      %p85 = scmp.eq.s32.totalorder %s19, 0
      %p86 = por %p84, %p85
      %p87 = scmp.le.s32.totalorder 1, %s13
      %p88 = scmp.lt.s32.totalorder %s13, 3
      %p89 = pnand %p87, %p88
      %p90 = pneg %p89
      // Predicated region
      $region9: #{tpu_custom_call.1} parent=5 // pred_check
        _
      $region10: #{tpu_custom_call.1} parent=5 // pred_check_branch
        %92 = sbr.rel (%p89) target = $region12
      $region11: #{tpu_custom_call.1} parent=5 // pred_region
        %s93 = ssub.s32 %s13, 1
      $region12: #{tpu_custom_call.1} parent=5 // pred_fallthru
        _
      %p94 = scmp.lt.s32.totalorder %s13, 2
      // Predicated region
      $region13: #{tpu_custom_call.1} parent=5 // pred_check
        %p95 = pneg %p94
      $region14: #{tpu_custom_call.1} parent=5 // pred_check_branch
        %97 = sbr.rel (%p95) target = $region16
      $region15: #{tpu_custom_call.1} parent=5 // pred_region
        // Predicated region
        $region17: #{tpu_custom_call.1} parent=15 // pred_check
          %p98 = pneg %p47
        $region18: #{tpu_custom_call.1} parent=15 // pred_check_branch
          %100 = sbr.rel (%p98) target = $region20
        $region19: #{tpu_custom_call.1} parent=15 // pred_region
          %s101 = sand.u32 %s37, 1
          %s102 = scalar_lea.sflag [#allocation4], %s101
          %s103 = sand.u32 %s37, 1
          %s104 = smul.addr %s103, 8
          %s105 = scalar_lea.vmem [#allocation3], %s104
          %s106 = sadd.s32 %s20, %s21
          %s108 = ssub.s32 128, 128
          %109 = vsyncadd %s102, %s108
          %s110 = smul.addr %s106, 128
          %s111 = scalar_lea.hbm %s0, %s110
          %s113 = sshll.u32 %s105, 4
          %s114 = int_to_ptr.vmem [resolvable:$true] %s113
          %116 = dma.hbm_to_vmem [thread:$0]  %s111, 128, %s114, %s102
        $region20: #{tpu_custom_call.1} parent=15 // pred_fallthru
          _
      $region16: #{tpu_custom_call.1} parent=5 // pred_fallthru
        _
      %p117 = scmp.le.s32.totalorder 1, %s13
      %p118 = scmp.lt.s32.totalorder %s13, 3
      %p119 = pnand %p117, %p118
      %p120 = pneg %p119
      // Predicated region
      $region21: #{tpu_custom_call.1} parent=5 // pred_check
        _
      $region22: #{tpu_custom_call.1} parent=5 // pred_check_branch
        %122 = sbr.rel (%p119) target = $region24
      $region23: #{tpu_custom_call.1} parent=5 // pred_region
        %s123 = ssub.s32 %s13, 1
        %s124 = sand.u32 %s40, 1
        %s125 = scalar_lea.sflag [#allocation4], %s124
        %s126 = sand.u32 %s40, 1
        %s127 = smul.addr %s126, 8
        %s128 = scalar_lea.vmem [#allocation3], %s127
        // Predicated region
        $region25: #{tpu_custom_call.1} parent=23 // pred_check
          %p129 = pneg %p53
        $region26: #{tpu_custom_call.1} parent=23 // pred_check_branch
          %131 = sbr.rel (%p129) target = $region28
        $region27: #{tpu_custom_call.1} parent=23 // pred_region
          %132 = dma.done %s125, 128
        $region28: #{tpu_custom_call.1} parent=23 // pred_fallthru
          _
        %s133 = sand.u32 %s40, 1
        %s134 = scalar_lea.sflag [#allocation4], %s133
        %s135 = sand.u32 %s40, 1
        %s136 = smul.addr %s135, 8
        %s137 = scalar_lea.vmem [#allocation3], %s136
        %p138 = pneg %p53
        %p139 = pneg %p50
        %p140 = pneg %p79
        %p141 = pneg %p76
        %s142 = sand.u32 %s66, 1
        %s143 = scalar_lea.sflag [#allocation5], %s142
        %s144 = sand.u32 %s66, 1
        %s145 = smul.addr %s144, 8
        %s146 = scalar_lea.vmem [#allocation6], %s145
        %s147 = sadd.s32 %s22, %s23
        %p148 = scmp.eq.s32.totalorder %s23, 0
        // Predicated region
        $region29: #{tpu_custom_call.1} parent=23 // pred_check
          %p149 = pneg %p148
        $region30: #{tpu_custom_call.1} parent=23 // pred_check_branch
          %151 = sbr.rel (%p149) target = $region32
        $region31: #{tpu_custom_call.1} parent=23 // pred_region
          %152 = vst [vmem:[#allocation2] sm:$0xff] 0.0
        $region32: #{tpu_custom_call.1} parent=23 // pred_fallthru
          _
        %v153 = vld [vmem:[%s128] sm:$0xff]
        %v154 = vld [vmem:[#allocation2] sm:$0xff]
        %v155 = vmul.f32 %v153, %v153
        %v156 = vadd.f32 %v154, %v155
        %157 = vst [vmem:[#allocation2] sm:$0xff] %v156
        // Predicated region
        $region33: #{tpu_custom_call.1} parent=23 // pred_check
          %p158 = pneg %p148
        $region34: #{tpu_custom_call.1} parent=23 // pred_check_branch
          %160 = sbr.rel (%p158) target = $region36
        $region35: #{tpu_custom_call.1} parent=23 // pred_region
          %v161 = vld [vmem:[#allocation2] sm:$0xff]
          %v162 = vadd.f32 %v161, 0.0
          %163 = vst [vmem:[%s146] sm:$0xff] %v162
        $region36: #{tpu_custom_call.1} parent=23 // pred_fallthru
          _
        %s164 = sand.u32 %s66, 1
        %s165 = scalar_lea.sflag [#allocation5], %s164
        %s166 = sand.u32 %s66, 1
        %s167 = smul.addr %s166, 8
        %s168 = scalar_lea.vmem [#allocation6], %s167
        // Predicated region
        $region37: #{tpu_custom_call.1} parent=23 // pred_check
          %p169 = pneg %p76
        $region38: #{tpu_custom_call.1} parent=23 // pred_check_branch
          %171 = sbr.rel (%p169) target = $region40
        $region39: #{tpu_custom_call.1} parent=23 // pred_region
          %s173 = ssub.s32 128, 128
          %174 = vsyncadd %s165, %s173
          %s175 = smul.addr %s22, 128
          %s176 = scalar_lea.hbm %s1, %s175
          %s178 = sshll.u32 %s168, 4
          %s179 = int_to_ptr.vmem [resolvable:$true] %s178
          %181 = dma.vmem_to_hbm [thread:$0]  %s179, 128, %s176, %s165
        $region40: #{tpu_custom_call.1} parent=23 // pred_fallthru
          _
      $region24: #{tpu_custom_call.1} parent=5 // pred_fallthru
        _
      %p182 = scmp.le.s32.totalorder 2, %s13
      // Predicated region
      $region41: #{tpu_custom_call.1} parent=5 // pred_check
        %p183 = pneg %p182
      $region42: #{tpu_custom_call.1} parent=5 // pred_check_branch
        %185 = sbr.rel (%p183) target = $region44
      $region43: #{tpu_custom_call.1} parent=5 // pred_region
        %s186 = ssub.s32 %s13, 2
        // Predicated region
        $region45: #{tpu_custom_call.1} parent=43 // pred_check
          %p187 = pneg %p82
        $region46: #{tpu_custom_call.1} parent=43 // pred_check_branch
          %189 = sbr.rel (%p187) target = $region48
        $region47: #{tpu_custom_call.1} parent=43 // pred_region
          %s190 = sand.u32 %s67, 1
          %s191 = scalar_lea.sflag [#allocation5], %s190
          %s192 = sand.u32 %s67, 1
          %s193 = smul.addr %s192, 8
          %s194 = scalar_lea.vmem [#allocation6], %s193
          %195 = dma.done %s191, 128
        $region48: #{tpu_custom_call.1} parent=43 // pred_fallthru
          _
      $region44: #{tpu_custom_call.1} parent=5 // pred_fallthru
        _
    $region6: #{tpu_custom_call.1} parent=1 // loop_footer
      %s17 = sadd.s32 1, %s13
    $region7: #{tpu_custom_call.1} parent=1 // loop_footer_branch
      %12 = sbr.rel target = $region3
    $region8: #{tpu_custom_call.1} parent=1 // loop_exit
      _
    %196 = vsyncpa [#allocation4], 1
    %s197 = scalar_lea.sflag [#allocation4], 1
    %198 = vsyncpa %s197, 1
    %199 = vsyncpa [#allocation5], 1
    %s200 = scalar_lea.sflag [#allocation5], 1
    %201 = vsyncpa %s200, 1

</llo_original>
